<compile_context>
chip_gen: v5e
topology: v5e:2x2
jax: 0.10.0
libtpu: 0.0.40
codegen_flags: <defaults>
</compile_context>

<pallas_src>
import functools

import jax
import jax.numpy as jnp
import numpy as np
from jax.experimental import pallas as pl
from jax.experimental.pallas import tpu as pltpu


def _cdiv(a, b):
    return -(-a // b)


def _round_up(x, m):
    return _cdiv(x, m) * m


# ----------------------------------------------------------------------------
# Kernels
# ----------------------------------------------------------------------------

def _gate_kernel_single(x_ref, w_ref, o_ref, *, precision):
    """Single K step: whole reduction in one MXU pass, no accumulator scratch."""
    o_ref[...] = jnp.dot(
        x_ref[...], w_ref[...],
        preferred_element_type=jnp.float32, precision=precision,
    ).astype(o_ref.dtype)


def _gate_kernel_multi(x_ref, w_ref, o_ref, acc_ref, *, tk, weight_resident,
                       precision):
    """Multi K step: f32 VMEM accumulator, init at k==0, store at k==last.

    If weight_resident, w_ref holds the full (K_pad, N_pad) weight in VMEM and
    we slice the current K slab out of it (no per-M-tile weight re-fetch).
    """
    k = pl.program_id(1)

    @pl.when(k == 0)
    def _init():
        acc_ref[...] = jnp.zeros_like(acc_ref)

    if weight_resident:
        start = pl.multiple_of(k * tk, 128)
        w = w_ref[pl.ds(start, tk), :]
    else:
        w = w_ref[...]

    acc_ref[...] += jnp.dot(
        x_ref[...], w, preferred_element_type=jnp.float32, precision=precision
    )

    @pl.when(k == pl.num_programs(1) - 1)
    def _finalize():
        o_ref[...] = acc_ref[...].astype(o_ref.dtype)


# ----------------------------------------------------------------------------
# Wrapper: LinearTopKGate forward
# ----------------------------------------------------------------------------

def linear_topk_gate(x, wg_weight, *, fp32_gate=True):
    """x: [..., model_dim]; wg_weight: [num_global_experts, model_dim] (torch layout).

    Returns logits of shape [..., num_global_experts] = x @ wg_weight.T.
    """
    orig_shape = x.shape
    K = orig_shape[-1]
    E = wg_weight.shape[0]
    assert wg_weight.shape[1] == K, "weight/model_dim mismatch"

    M = int(np.prod(orig_shape[:-1])) if len(orig_shape) > 1 else 1

    # Operands stay in x's native dtype (no HBM up-cast of the big tensor).
    # fp32_gate: f32 output + HIGHEST-precision MXU when operands are already
    # f32; bf16 inputs keep bf16 operands with f32 accumulation (relaxation).
    op_dtype = x.dtype
    out_dtype = jnp.float32 if fp32_gate else x.dtype
    precision = (jax.lax.Precision.HIGHEST
                 if (fp32_gate and op_dtype == jnp.float32) else None)

    itemsize = jnp.dtype(op_dtype).itemsize
    N_pad = _round_up(max(E, 1), 128)          # lane-dense, unmasked output stores

    x2 = x.reshape(M, K)

    # --- K tiling: ragged K tiles are unsafe (garbage feeds the reduction) ---
    tk_cap = 4096 if itemsize <= 2 else 2048
    if K <= tk_cap:
        TK, K_pad = K, K                       # single step; block == full K dim
    else:
        TK = None
        if K % 128 == 0:
            for cand in range(tk_cap, 511, -128):
                if K % cand == 0:              # prefer a tile that divides K
                    TK = cand
                    break
        if TK is None:                         # rare: pad K (extra x copy only here)
            TK = tk_cap
        K_pad = _round_up(K, TK)
    k_steps = K_pad // TK

    # --- M tiling: big tiles, but >=2 tiles whenever possible (v7x: 2 TCs) ---
    if M > 1024:
        TM = 512
    elif M > 8:
        TM = _round_up(_cdiv(M, 2), 8)         # exactly ~2 M tiles
    else:
        TM = 8
    m_steps = _cdiv(M, TM)

    # Ragged M is safe (extra rows never written past out_shape); only pad the
    # degenerate M < 8 case and, if forced, the K remainder.
    M_work = M
    if M < 8:
        x2 = jnp.pad(x2, ((0, 8 - M), (0, 0)))
        M_work = 8
    if K_pad != K:
        x2 = jnp.pad(x2, ((0, 0), (0, K_pad - K)))

    # Weight: [E, K] -> [K_pad, N_pad] in operand dtype (tiny array, cheap).
    wt = jnp.transpose(wg_weight).astype(op_dtype)
    wt = jnp.pad(wt, ((0, K_pad - K), (0, N_pad - E)))

    # --- weight residency: keep the whole gate weight in VMEM when small -----
    w_bytes = K_pad * N_pad * itemsize
    weight_resident = (k_steps == 1) or (w_bytes <= 6 * 2**20)

    # --- VMEM budget: actual double-buffered footprint + ~50% headroom -------
    x_buf = 2 * TM * TK * itemsize
    w_buf = 2 * (K_pad if weight_resident else TK) * N_pad * itemsize
    acc_buf = TM * N_pad * 4 if k_steps > 1 else 0
    o_buf = 2 * TM * N_pad * jnp.dtype(out_dtype).itemsize
    footprint = x_buf + w_buf + acc_buf + o_buf
    vmem_limit = int(min(max(footprint * 3 // 2, 16 * 2**20), 44 * 2**20))

    if k_steps == 1:
        grid = (m_steps,)
        kernel = functools.partial(_gate_kernel_single, precision=precision)
        in_specs = [
            pl.BlockSpec((TM, K_pad), lambda i: (i, 0)),      # activations
            pl.BlockSpec((K_pad, N_pad), lambda i: (0, 0)),   # weight (resident)
        ]
        out_specs = pl.BlockSpec((TM, N_pad), lambda i: (i, 0))
        scratch_shapes = []
        dims = ("parallel",)
    else:
        grid = (m_steps, k_steps)
        kernel = functools.partial(
            _gate_kernel_multi, tk=TK, weight_resident=weight_resident,
            precision=precision)
        if weight_resident:
            w_spec = pl.BlockSpec((K_pad, N_pad), lambda i, k: (0, 0))
        else:
            w_spec = pl.BlockSpec((TK, N_pad), lambda i, k: (k, 0))
        in_specs = [
            pl.BlockSpec((TM, TK), lambda i, k: (i, k)),      # activations
            w_spec,                                           # gate weight
        ]
        out_specs = pl.BlockSpec((TM, N_pad), lambda i, k: (i, 0))
        scratch_shapes = [pltpu.VMEM((TM, N_pad), jnp.float32)]
        dims = ("parallel", "arbitrary")

    out = pl.pallas_call(
        kernel,
        out_shape=jax.ShapeDtypeStruct((M_work, N_pad), out_dtype),
        grid_spec=pltpu.PrefetchScalarGridSpec(
            num_scalar_prefetch=0,
            grid=grid,
            in_specs=in_specs,
            out_specs=out_specs,
            scratch_shapes=scratch_shapes,
        ),
        compiler_params=pltpu.CompilerParams(
            dimension_semantics=dims,
            vmem_limit_bytes=vmem_limit,
        ),
    )(x2, wt)

    # TODO(synk): the [:, :E] slice could be fused into the consumer (softmax /
    # top-k) to save one small HBM round-trip of the padded logits.
    out = out[:M, :E]
    return out.reshape(*orig_shape[:-1], E)


# Pure-JAX reference (HIGHEST precision to reflect fp32-gate semantics).
def linear_topk_gate_ref(x, wg_weight):
    return jnp.einsum(
        "...d,ed->...e",
        x.astype(jnp.float32), wg_weight.astype(jnp.float32),
        precision=jax.lax.Precision.HIGHEST,
    )


# ----------------------------------------------------------------------------
# Main
# ----------------------------------------------------------------------------

if __name__ == "__main__":
    key = jax.random.PRNGKey(0)
    k_w, k_x, k_w2, k_x2 = jax.random.split(key, 4)

    # ---- Config 1: module defaults at small shape (single-K-step path) ------
    model_dim, num_experts, batch, seq = 128, 8, 2, 8
    bound = 1.0 / np.sqrt(model_dim)   # torch.nn.Linear default init range
    wg_weight = jax.random.uniform(
        k_w, (num_experts, model_dim), jnp.float32, -bound, bound)
    x = jax.random.normal(k_x, (batch, seq, model_dim), dtype=jnp.float32)

    fwd = jax.jit(functools.partial(linear_topk_gate, fp32_gate=True))
    out = jax.block_until_ready(fwd(x, wg_weight))
    ref = linear_topk_gate_ref(x, wg_weight)
    np.testing.assert_allclose(np.asarray(out), np.asarray(ref),
                               atol=1e-5, rtol=1e-5)
    assert out.shape == (batch, seq, num_experts)

    # ---- Config 2: exercises the multi-K-step accumulator path --------------
    model_dim2, num_experts2, tokens2 = 4096, 8, 16
    bound2 = 1.0 / np.sqrt(model_dim2)
    wg_weight2 = jax.random.uniform(
        k_w2, (num_experts2, model_dim2), jnp.float32, -bound2, bound2)
    x2 = jax.random.normal(k_x2, (tokens2, model_dim2), dtype=jnp.float32)

    out2 = jax.block_until_ready(
        jax.jit(functools.partial(linear_topk_gate, fp32_gate=True))(x2, wg_weight2))
    ref2 = linear_topk_gate_ref(x2, wg_weight2)
    np.testing.assert_allclose(np.asarray(out2), np.asarray(ref2),
                               atol=1e-4, rtol=1e-5)
    assert out2.shape == (tokens2, num_experts2)

    print("KERNEL_OK")
</pallas_src>

<mosaic_0001>
module attributes {stable_mosaic.version = 11 : i64} {
  func.func @_gate_kernel_single(%arg0: i32, %arg1: memref<8x128xf32, #tpu.memory_space<vmem>>, %arg2: memref<128x128xf32, #tpu.memory_space<vmem>>, %arg3: memref<8x128xf32, #tpu.memory_space<vmem>>) attributes {dimension_semantics = [#tpu.dimension_semantics<parallel>], iteration_bounds = array<i64: 2>, scalar_prefetch = 0 : i64, scratch_operands = 0 : i64, tpu.core_type = #tpu.core_type<tc>, window_params = [{transform_indices = @transform_0, window_bounds = array<i64: 8, 128>}, {pipeline_mode = #tpu.pipeline_mode<synchronous>, transform_indices = @transform_1, window_bounds = array<i64: 128, 128>}, {transform_indices = @transform_2, window_bounds = array<i64: 8, 128>}]} {
    %c0 = arith.constant 0 : index
    %c0_0 = arith.constant 0 : index
    %0 = vector.load %arg1[%c0, %c0_0] : memref<8x128xf32, #tpu.memory_space<vmem>>, vector<8x128xf32>
    %c0_1 = arith.constant 0 : index
    %c0_2 = arith.constant 0 : index
    %1 = vector.load %arg2[%c0_1, %c0_2] : memref<128x128xf32, #tpu.memory_space<vmem>>, vector<128x128xf32>
    %cst = arith.constant dense<0.000000e+00> : vector<8x128xf32>
    %2 = tpu.matmul %0, %1, %cst {dimension_numbers = #tpu.dot_dimension_numbers<[1], [0], [0], [1], [0, 0, 1, 1], [], []>, precision = #tpu.contract_precision<fp32>} : vector<8x128xf32>, vector<128x128xf32>, vector<8x128xf32> -> vector<8x128xf32>
    %c0_3 = arith.constant 0 : index
    %c0_4 = arith.constant 0 : index
    %3 = vector.load %arg3[%c0_3, %c0_4] : memref<8x128xf32, #tpu.memory_space<vmem>>, vector<8x128xf32>
    tpu.vector_store %arg3[%c0_3, %c0_4], %2 {strides = array<i32>} : memref<8x128xf32, #tpu.memory_space<vmem>>, vector<8x128xf32>,
    return
  }
  func.func @transform_0(%arg0: i32) -> (i32, i32) {
    %c0_i32 = arith.constant 0 : i32
    %c0_i32_0 = arith.constant 0 : i32
    return %arg0, %c0_i32 : i32, i32
  }
  func.func @transform_1(%arg0: i32) -> (i32, i32) {
    %c0_i32 = arith.constant 0 : i32
    %c0_i32_0 = arith.constant 0 : i32
    %c0_i32_1 = arith.constant 0 : i32
    return %c0_i32, %c0_i32_0 : i32, i32
  }
  func.func @transform_2(%arg0: i32) -> (i32, i32) {
    %c0_i32 = arith.constant 0 : i32
    %c0_i32_0 = arith.constant 0 : i32
    return %arg0, %c0_i32 : i32, i32
  }
}

</mosaic_0001>

<llo_original>
// kernel: linear_topk_gate.1
$region0: #{linear_topk_gate.1}
  #allocation0 [shape = 'u32[]', space=smem, size = 0x4, offset = 0x4, fixed_abs, tag = 'smem constant byte address 0x4 - core index']
  #allocation1 [shape = 'u32[72,128]{1,0:T(1,128)}', space=vmem, size = 0x9000, scoped, tag = 'internal scratch']
  %s0 = inlined_call_operand.vmem [shape: f32[16,128], index: 0, kind: input, shape index: {}]
  %s1 = inlined_call_operand.vmem [shape: f32[128,128], index: 1, kind: input, shape index: {}]
  %s2 = inlined_call_operand.vmem [shape: f32[16,128], index: 2, kind: output, shape index: {}]
  %s3 = sld [smem:[#allocation0]]
  $region41: #{linear_topk_gate.1} parent=0
    _
  %s5 = ssub.s32 1, %s3
  %s6 = scalar_select 0, %s5, %s3
  loop: start=0, step=1, limit=4
  $region2: #{linear_topk_gate.1} parent=0 // loop_pre_header
    _
  $region3: #{linear_topk_gate.1} parent=0 // loop_header
    %s8 = sphi 0, %s12
    %p9 = scmp.ge.s32.totalorder %s8, 4
    %s18 = sphi 0, %s20
    %s21 = sphi 0, %s18
    %s22 = sphi 0, %s21
    %s38 = sphi 0, %s22
    %s42 = sphi 0, %s42
    %s44 = sphi 0, %s42
    %s45 = sphi 0, %s44
    %s59 = sphi 0, %s45
    %s65 = sphi 0, %s67
    %s68 = sphi 0, %s65
    %s69 = sphi 0, %s68
    %s85 = sphi 0, %s69
  $region4: #{linear_topk_gate.1} parent=0 // loop_header_branch
    %11 = sbr.rel (%p9) target = $region8
  $region5: #{linear_topk_gate.1} parent=0 // loop_body
    %s13 = ssub.s32 %s8, 1
    %s14 = ssub.s32 %s8, 2
    %s15 = sadd.s32 %s8, 1
    %s16 = ssub.s32 %s8, %s15
    %p17 = scmp.eq.s32.totalorder %s16, 0
    %s19 = sadd.s32 %s18, 1
    %s20 = scalar_select %p17, %s18, %s19
    %p23 = pneg %p17
    %p24 = scmp.eq.s32.totalorder %s8, 1
    %p25 = por %p23, %p24
    %p26 = scmp.ne.s32.totalorder %s18, %s21
    %p27 = scmp.eq.s32.totalorder %s8, 0
    %p28 = por %p26, %p27
    %p29 = scmp.ne.s32.totalorder %s18, %s21
    %p30 = scmp.eq.s32.totalorder %s13, 1
    %p31 = por %p29, %p30
    %p32 = scmp.ne.s32.totalorder %s21, %s22
    %p33 = scmp.eq.s32.totalorder %s13, 0
    %p34 = por %p32, %p33
    %p35 = scmp.ne.s32.totalorder %s21, %s22
    %p36 = scmp.eq.s32.totalorder %s14, 1
    %p37 = por %p35, %p36
    %p39 = scmp.ne.s32.totalorder %s22, %s38
    %p40 = scmp.eq.s32.totalorder %s14, 0
    %p41 = por %p39, %p40
    %s43 = sadd.s32 %s42, 1
    %p46 = scmp.eq.s32.totalorder %s8, 1
    %p47 = scmp.ne.s32.totalorder %s42, %s44
    %p48 = scmp.eq.s32.totalorder %s8, 0
    %p49 = por %p47, %p48
    %p50 = scmp.ne.s32.totalorder %s42, %s44
    %p51 = scmp.eq.s32.totalorder %s13, 1
    %p52 = por %p50, %p51
    %p53 = scmp.ne.s32.totalorder %s44, %s45
    %p54 = scmp.eq.s32.totalorder %s13, 0
    %p55 = por %p53, %p54
    %p56 = scmp.ne.s32.totalorder %s44, %s45
    %p57 = scmp.eq.s32.totalorder %s14, 1
    %p58 = por %p56, %p57
    %p60 = scmp.ne.s32.totalorder %s45, %s59
    %p61 = scmp.eq.s32.totalorder %s14, 0
    %p62 = por %p60, %p61
    %s63 = ssub.s32 %s8, %s15
    %p64 = scmp.eq.s32.totalorder %s63, 0
    %s66 = sadd.s32 %s65, 1
    %s67 = scalar_select %p64, %s65, %s66
    %p70 = pneg %p64
    %p71 = scmp.eq.s32.totalorder %s8, 1
    %p72 = por %p70, %p71
    %p73 = scmp.ne.s32.totalorder %s65, %s68
    %p74 = scmp.eq.s32.totalorder %s8, 0
    %p75 = por %p73, %p74
    %p76 = scmp.ne.s32.totalorder %s65, %s68
    %p77 = scmp.eq.s32.totalorder %s13, 1
    %p78 = por %p76, %p77
    %p79 = scmp.ne.s32.totalorder %s68, %s69
    %p80 = scmp.eq.s32.totalorder %s13, 0
    %p81 = por %p79, %p80
    %p82 = scmp.ne.s32.totalorder %s68, %s69
    %p83 = scmp.eq.s32.totalorder %s14, 1
    %p84 = por %p82, %p83
    %p86 = scmp.ne.s32.totalorder %s69, %s85
    %p87 = scmp.eq.s32.totalorder %s14, 0
    %p88 = por %p86, %p87
    %p89 = scmp.le.s32.totalorder 1, %s8
    %p90 = scmp.lt.s32.totalorder %s8, 3
    %p91 = pnand %p89, %p90
    %p92 = pneg %p91
    // Predicated region
    $region9: #{linear_topk_gate.1} parent=5 // pred_check
      _
    $region10: #{linear_topk_gate.1} parent=5 // pred_check_branch
      %94 = sbr.rel (%p91) target = $region12
    $region11: #{linear_topk_gate.1} parent=5 // pred_region
      %s95 = ssub.s32 %s8, 1
      // Predicated region
      $region13: #{linear_topk_gate.1} parent=11 // pred_check
        %p96 = pneg %p55
      $region14: #{linear_topk_gate.1} parent=11 // pred_check_branch
        %98 = sbr.rel (%p96) target = $region16
      $region15: #{linear_topk_gate.1} parent=11 // pred_region
        _
      $region16: #{linear_topk_gate.1} parent=11 // pred_fallthru
        _
    $region12: #{linear_topk_gate.1} parent=5 // pred_fallthru
      _
    %p99 = scmp.lt.s32.totalorder %s8, 2
    // Predicated region
    $region17: #{linear_topk_gate.1} parent=5 // pred_check
      %p100 = pneg %p99
    $region18: #{linear_topk_gate.1} parent=5 // pred_check_branch
      %102 = sbr.rel (%p100) target = $region20
    $region19: #{linear_topk_gate.1} parent=5 // pred_region
      // Predicated region
      $region21: #{linear_topk_gate.1} parent=19 // pred_check
        %p103 = pneg %p28
      $region22: #{linear_topk_gate.1} parent=19 // pred_check_branch
        %105 = sbr.rel (%p103) target = $region24
      $region23: #{linear_topk_gate.1} parent=19 // pred_region
        %p106 = scmp.lt.s32.totalorder %s8, 1
        %s107 = scalar_select %p106, %s8, 1
        %s108 = smul.addr %s107, 8
        %s109 = scalar_lea.vmem %s0, %s108
      $region24: #{linear_topk_gate.1} parent=19 // pred_fallthru
        _
    $region20: #{linear_topk_gate.1} parent=5 // pred_fallthru
      _
    %p110 = scmp.le.s32.totalorder 1, %s8
    %p111 = scmp.lt.s32.totalorder %s8, 3
    %p112 = pnand %p110, %p111
    %p113 = pneg %p112
    // Predicated region
    $region25: #{linear_topk_gate.1} parent=5 // pred_check
      _
    $region26: #{linear_topk_gate.1} parent=5 // pred_check_branch
      %115 = sbr.rel (%p112) target = $region28
    $region27: #{linear_topk_gate.1} parent=5 // pred_region
      %s116 = ssub.s32 %s8, 1
      %p117 = scmp.lt.s32.totalorder %s13, 1
      %s118 = scalar_select %p117, %s13, 1
      %s119 = smul.addr %s118, 8
      %s120 = scalar_lea.vmem %s0, %s119
      %p121 = pneg %p34
      %p122 = pneg %p31
      %p123 = pneg %p55
      %p124 = pneg %p52
      %p125 = pneg %p81
      %p126 = pneg %p78
      %p127 = scmp.lt.s32.totalorder %s13, 1
      %s128 = scalar_select %p127, %s13, 1
      %s129 = smul.addr %s128, 8
      %s130 = scalar_lea.vmem %s2, %s129
      %p131 = scmp.lt.s32.totalorder %s13, 1
      %s132 = scalar_select %p131, %s13, 1
      %s133 = smul.addr %s132, 8
      %s134 = scalar_lea.vmem %s0, %s133
      %p135 = scmp.lt.s32.totalorder %s13, 1
      %s136 = scalar_select %p135, %s13, 1
      %s137 = smul.addr %s136, 8
      %s138 = scalar_lea.vmem %s2, %s137
      %v139 = vld [vmem:[%s134] sm:$0xff]
      %v140 = vld [vmem:[%s1] sm:$0xff]
      %v141 = vld [vmem:[%s1 + $0x8] sm:$0xff]
      %v142 = vld [vmem:[%s1 + $0x10] sm:$0xff]
      %v143 = vld [vmem:[%s1 + $0x18] sm:$0xff]
      %v144 = vld [vmem:[%s1 + $0x20] sm:$0xff]
      %v145 = vld [vmem:[%s1 + $0x28] sm:$0xff]
      %v146 = vld [vmem:[%s1 + $0x30] sm:$0xff]
      %v147 = vld [vmem:[%s1 + $0x38] sm:$0xff]
      %v148 = vld [vmem:[%s1 + $0x40] sm:$0xff]
      %v149 = vld [vmem:[%s1 + $0x48] sm:$0xff]
      %v150 = vld [vmem:[%s1 + $0x50] sm:$0xff]
      %v151 = vld [vmem:[%s1 + $0x58] sm:$0xff]
      %v152 = vld [vmem:[%s1 + $0x60] sm:$0xff]
      %v153 = vld [vmem:[%s1 + $0x68] sm:$0xff]
      %v154 = vld [vmem:[%s1 + $0x70] sm:$0xff]
      %v155 = vld [vmem:[%s1 + $0x78] sm:$0xff]
      %v156 = vand.u32 %v155, 4294901760
      %157 = vmatpush.msra.mxu0 %v156
      %v158 = vand.u32 %v154, 4294901760
      %159 = vmatpush.msra.mxu0 %v158
      %v160 = vand.u32 %v153, 4294901760
      %161 = vmatpush.msra.mxu0 %v160
      %v162 = vand.u32 %v152, 4294901760
      %163 = vmatpush.msra.mxu0 %v162
      %v164 = vand.u32 %v151, 4294901760
      %165 = vmatpush.msra.mxu0 %v164
      %v166 = vand.u32 %v150, 4294901760
      %167 = vmatpush.msra.mxu0 %v166
      %v168 = vand.u32 %v149, 4294901760
      %169 = vmatpush.msra.mxu0 %v168
      %v170 = vand.u32 %v148, 4294901760
      %171 = vmatpush.msra.mxu0 %v170
      %v172 = vand.u32 %v147, 4294901760
      %173 = vmatpush.msra.mxu0 %v172
      %v174 = vand.u32 %v146, 4294901760
      %175 = vmatpush.msra.mxu0 %v174
      %v176 = vand.u32 %v145, 4294901760
      %177 = vmatpush.msra.mxu0 %v176
      %v178 = vand.u32 %v144, 4294901760
      %179 = vmatpush.msra.mxu0 %v178
      %v180 = vand.u32 %v143, 4294901760
      %181 = vmatpush.msra.mxu0 %v180
      %v182 = vand.u32 %v142, 4294901760
      %183 = vmatpush.msra.mxu0 %v182
      %v184 = vand.u32 %v141, 4294901760
      %185 = vmatpush.msra.mxu0 %v184
      %v186 = vand.u32 %v140, 4294901760
      %187 = vmatpush.msra.mxu0 %v186
      %v188 = vand.u32 %v139, 4294901760
      %v189 = vsub.f32 %v139, %v188
      %v190 = vand.u32 %v189, 4294901760
      %v191 = vsub.f32 %v189, %v190
      %v192 = vand.u32 %v191, 4294901760
      %193 = vmatmul.f32.gmra.mxu0 %v192
      %v194 = vpop.f32.mrf.mxu0
      %v195 = vadd.f32 0.0, %v194
      %196 = vdwg.mxu0
      %v197 = vand.u32 %v155, 4294901760
      %v198 = vsub.f32 %v155, %v197
      %v199 = vand.u32 %v198, 4294901760
      %v200 = vsub.f32 %v198, %v199
      %v201 = vand.u32 %v200, 4294901760
      %202 = vmatpush.msra.mxu0 %v201
      %v203 = vand.u32 %v154, 4294901760
      %v204 = vsub.f32 %v154, %v203
      %v205 = vand.u32 %v204, 4294901760
      %v206 = vsub.f32 %v204, %v205
      %v207 = vand.u32 %v206, 4294901760
      %208 = vmatpush.msra.mxu0 %v207
      %v209 = vand.u32 %v153, 4294901760
      %v210 = vsub.f32 %v153, %v209
      %v211 = vand.u32 %v210, 4294901760
      %v212 = vsub.f32 %v210, %v211
      %v213 = vand.u32 %v212, 4294901760
      %214 = vmatpush.msra.mxu0 %v213
      %v215 = vand.u32 %v152, 4294901760
      %v216 = vsub.f32 %v152, %v215
      %v217 = vand.u32 %v216, 4294901760
      %v218 = vsub.f32 %v216, %v217
      %v219 = vand.u32 %v218, 4294901760
      %220 = vmatpush.msra.mxu0 %v219
      %v221 = vand.u32 %v151, 4294901760
      %v222 = vsub.f32 %v151, %v221
      %v223 = vand.u32 %v222, 4294901760
      %v224 = vsub.f32 %v222, %v223
      %v225 = vand.u32 %v224, 4294901760
      %226 = vmatpush.msra.mxu0 %v225
      %v227 = vand.u32 %v150, 4294901760
      %v228 = vsub.f32 %v150, %v227
      %v229 = vand.u32 %v228, 4294901760
      %v230 = vsub.f32 %v228, %v229
      %v231 = vand.u32 %v230, 4294901760
      %232 = vmatpush.msra.mxu0 %v231
      %v233 = vand.u32 %v149, 4294901760
      %v234 = vsub.f32 %v149, %v233
      %v235 = vand.u32 %v234, 4294901760
      %v236 = vsub.f32 %v234, %v235
      %v237 = vand.u32 %v236, 4294901760
      %238 = vmatpush.msra.mxu0 %v237
      %v239 = vand.u32 %v148, 4294901760
      %v240 = vsub.f32 %v148, %v239
      %v241 = vand.u32 %v240, 4294901760
      %v242 = vsub.f32 %v240, %v241
      %v243 = vand.u32 %v242, 4294901760
      %244 = vmatpush.msra.mxu0 %v243
      %v245 = vand.u32 %v147, 4294901760
      %v246 = vsub.f32 %v147, %v245
      %v247 = vand.u32 %v246, 4294901760
      %v248 = vsub.f32 %v246, %v247
      %v249 = vand.u32 %v248, 4294901760
      %250 = vmatpush.msra.mxu0 %v249
      %v251 = vand.u32 %v146, 4294901760
      %v252 = vsub.f32 %v146, %v251
      %v253 = vand.u32 %v252, 4294901760
      %v254 = vsub.f32 %v252, %v253
      %v255 = vand.u32 %v254, 4294901760
      %256 = vmatpush.msra.mxu0 %v255
      %v257 = vand.u32 %v145, 4294901760
      %v258 = vsub.f32 %v145, %v257
      %v259 = vand.u32 %v258, 4294901760
      %v260 = vsub.f32 %v258, %v259
      %v261 = vand.u32 %v260, 4294901760
      %262 = vmatpush.msra.mxu0 %v261
      %v263 = vand.u32 %v144, 4294901760
      %v264 = vsub.f32 %v144, %v263
      %v265 = vand.u32 %v264, 4294901760
      %v266 = vsub.f32 %v264, %v265
      %v267 = vand.u32 %v266, 4294901760
      %268 = vmatpush.msra.mxu0 %v267
      %v269 = vand.u32 %v143, 4294901760
      %v270 = vsub.f32 %v143, %v269
      %v271 = vand.u32 %v270, 4294901760
      %v272 = vsub.f32 %v270, %v271
      %v273 = vand.u32 %v272, 4294901760
      %274 = vmatpush.msra.mxu0 %v273
      %v275 = vand.u32 %v142, 4294901760
      %v276 = vsub.f32 %v142, %v275
      %v277 = vand.u32 %v276, 4294901760
      %v278 = vsub.f32 %v276, %v277
      %v279 = vand.u32 %v278, 4294901760
      %280 = vmatpush.msra.mxu0 %v279
      %v281 = vand.u32 %v141, 4294901760
      %v282 = vsub.f32 %v141, %v281
      %v283 = vand.u32 %v282, 4294901760
      %v284 = vsub.f32 %v282, %v283
      %v285 = vand.u32 %v284, 4294901760
      %286 = vmatpush.msra.mxu0 %v285
      %v287 = vand.u32 %v140, 4294901760
      %v288 = vsub.f32 %v140, %v287
      %v289 = vand.u32 %v288, 4294901760
      %v290 = vsub.f32 %v288, %v289
      %v291 = vand.u32 %v290, 4294901760
      %292 = vmatpush.msra.mxu0 %v291
      %v293 = vand.u32 %v139, 4294901760
      %294 = vmatmul.f32.gmra.mxu0 %v293
      %v295 = vpop.f32.mrf.mxu0
      %v296 = vadd.f32 %v195, %v295
      %297 = vdwg.mxu0
      %v298 = vand.u32 %v155, 4294901760
      %v299 = vsub.f32 %v155, %v298
      %300 = vmatpush.msra.mxu0 %v299
      %v301 = vand.u32 %v154, 4294901760
      %v302 = vsub.f32 %v154, %v301
      %303 = vmatpush.msra.mxu0 %v302
      %v304 = vand.u32 %v153, 4294901760
      %v305 = vsub.f32 %v153, %v304
      %306 = vmatpush.msra.mxu0 %v305
      %v307 = vand.u32 %v152, 4294901760
      %v308 = vsub.f32 %v152, %v307
      %309 = vmatpush.msra.mxu0 %v308
      %v310 = vand.u32 %v151, 4294901760
      %v311 = vsub.f32 %v151, %v310
      %312 = vmatpush.msra.mxu0 %v311
      %v313 = vand.u32 %v150, 4294901760
      %v314 = vsub.f32 %v150, %v313
      %315 = vmatpush.msra.mxu0 %v314
      %v316 = vand.u32 %v149, 4294901760
      %v317 = vsub.f32 %v149, %v316
      %318 = vmatpush.msra.mxu0 %v317
      %v319 = vand.u32 %v148, 4294901760
      %v320 = vsub.f32 %v148, %v319
      %321 = vmatpush.msra.mxu0 %v320
      %v322 = vand.u32 %v147, 4294901760
      %v323 = vsub.f32 %v147, %v322
      %324 = vmatpush.msra.mxu0 %v323
      %v325 = vand.u32 %v146, 4294901760
      %v326 = vsub.f32 %v146, %v325
      %327 = vmatpush.msra.mxu0 %v326
      %v328 = vand.u32 %v145, 4294901760
      %v329 = vsub.f32 %v145, %v328
      %330 = vmatpush.msra.mxu0 %v329
      %v331 = vand.u32 %v144, 4294901760
      %v332 = vsub.f32 %v144, %v331
      %333 = vmatpush.msra.mxu0 %v332
      %v334 = vand.u32 %v143, 4294901760
      %v335 = vsub.f32 %v143, %v334
      %336 = vmatpush.msra.mxu0 %v335
      %v337 = vand.u32 %v142, 4294901760
      %v338 = vsub.f32 %v142, %v337
      %339 = vmatpush.msra.mxu0 %v338
      %v340 = vand.u32 %v141, 4294901760
      %v341 = vsub.f32 %v141, %v340
      %342 = vmatpush.msra.mxu0 %v341
      %v343 = vand.u32 %v140, 4294901760
      %v344 = vsub.f32 %v140, %v343
      %345 = vmatpush.msra.mxu0 %v344
      %v346 = vand.u32 %v139, 4294901760
      %v347 = vsub.f32 %v139, %v346
      %348 = vmatmul.f32.gmra.mxu0 %v347
      %v349 = vpop.f32.mrf.mxu0
      %v350 = vadd.f32 %v296, %v349
      %351 = vdwg.mxu0
      %v352 = vand.u32 %v155, 4294901760
      %353 = vmatpush.msra.mxu0 %v352
      %v354 = vand.u32 %v154, 4294901760
      %355 = vmatpush.msra.mxu0 %v354
      %v356 = vand.u32 %v153, 4294901760
      %357 = vmatpush.msra.mxu0 %v356
      %v358 = vand.u32 %v152, 4294901760
      %359 = vmatpush.msra.mxu0 %v358
      %v360 = vand.u32 %v151, 4294901760
      %361 = vmatpush.msra.mxu0 %v360
      %v362 = vand.u32 %v150, 4294901760
      %363 = vmatpush.msra.mxu0 %v362
      %v364 = vand.u32 %v149, 4294901760
      %365 = vmatpush.msra.mxu0 %v364
      %v366 = vand.u32 %v148, 4294901760
      %367 = vmatpush.msra.mxu0 %v366
      %v368 = vand.u32 %v147, 4294901760
      %369 = vmatpush.msra.mxu0 %v368
      %v370 = vand.u32 %v146, 4294901760
      %371 = vmatpush.msra.mxu0 %v370
      %v372 = vand.u32 %v145, 4294901760
      %373 = vmatpush.msra.mxu0 %v372
      %v374 = vand.u32 %v144, 4294901760
      %375 = vmatpush.msra.mxu0 %v374
      %v376 = vand.u32 %v143, 4294901760
      %377 = vmatpush.msra.mxu0 %v376
      %v378 = vand.u32 %v142, 4294901760
      %379 = vmatpush.msra.mxu0 %v378
      %v380 = vand.u32 %v141, 4294901760
      %381 = vmatpush.msra.mxu0 %v380
      %v382 = vand.u32 %v140, 4294901760
      %383 = vmatpush.msra.mxu0 %v382
      %v384 = vand.u32 %v139, 4294901760
      %v385 = vsub.f32 %v139, %v384
      %v386 = vand.u32 %v385, 4294901760
      %387 = vmatmul.f32.gmra.mxu0 %v386
      %v388 = vpop.f32.mrf.mxu0
      %v389 = vadd.f32 %v350, %v388
      %390 = vdwg.mxu0
      %v391 = vand.u32 %v155, 4294901760
      %v392 = vsub.f32 %v155, %v391
      %v393 = vand.u32 %v392, 4294901760
      %394 = vmatpush.msra.mxu0 %v393
      %v395 = vand.u32 %v154, 4294901760
      %v396 = vsub.f32 %v154, %v395
      %v397 = vand.u32 %v396, 4294901760
      %398 = vmatpush.msra.mxu0 %v397
      %v399 = vand.u32 %v153, 4294901760
      %v400 = vsub.f32 %v153, %v399
      %v401 = vand.u32 %v400, 4294901760
      %402 = vmatpush.msra.mxu0 %v401
      %v403 = vand.u32 %v152, 4294901760
      %v404 = vsub.f32 %v152, %v403
      %v405 = vand.u32 %v404, 4294901760
      %406 = vmatpush.msra.mxu0 %v405
      %v407 = vand.u32 %v151, 4294901760
      %v408 = vsub.f32 %v151, %v407
      %v409 = vand.u32 %v408, 4294901760
      %410 = vmatpush.msra.mxu0 %v409
      %v411 = vand.u32 %v150, 4294901760
      %v412 = vsub.f32 %v150, %v411
      %v413 = vand.u32 %v412, 4294901760
      %414 = vmatpush.msra.mxu0 %v413
      %v415 = vand.u32 %v149, 4294901760
      %v416 = vsub.f32 %v149, %v415
      %v417 = vand.u32 %v416, 4294901760
      %418 = vmatpush.msra.mxu0 %v417
      %v419 = vand.u32 %v148, 4294901760
      %v420 = vsub.f32 %v148, %v419
      %v421 = vand.u32 %v420, 4294901760
      %422 = vmatpush.msra.mxu0 %v421
      %v423 = vand.u32 %v147, 4294901760
      %v424 = vsub.f32 %v147, %v423
      %v425 = vand.u32 %v424, 4294901760
      %426 = vmatpush.msra.mxu0 %v425
      %v427 = vand.u32 %v146, 4294901760
      %v428 = vsub.f32 %v146, %v427
      %v429 = vand.u32 %v428, 4294901760
      %430 = vmatpush.msra.mxu0 %v429
      %v431 = vand.u32 %v145, 4294901760
      %v432 = vsub.f32 %v145, %v431
      %v433 = vand.u32 %v432, 4294901760
      %434 = vmatpush.msra.mxu0 %v433
      %v435 = vand.u32 %v144, 4294901760
      %v436 = vsub.f32 %v144, %v435
      %v437 = vand.u32 %v436, 4294901760
      %438 = vmatpush.msra.mxu0 %v437
      %v439 = vand.u32 %v143, 4294901760
      %v440 = vsub.f32 %v143, %v439
      %v441 = vand.u32 %v440, 4294901760
      %442 = vmatpush.msra.mxu0 %v441
      %v443 = vand.u32 %v142, 4294901760
      %v444 = vsub.f32 %v142, %v443
      %v445 = vand.u32 %v444, 4294901760
      %446 = vmatpush.msra.mxu0 %v445
      %v447 = vand.u32 %v141, 4294901760
      %v448 = vsub.f32 %v141, %v447
      %v449 = vand.u32 %v448, 4294901760
      %450 = vmatpush.msra.mxu0 %v449
      %v451 = vand.u32 %v140, 4294901760
      %v452 = vsub.f32 %v140, %v451
      %v453 = vand.u32 %v452, 4294901760
      %454 = vmatpush.msra.mxu0 %v453
      %v455 = vand.u32 %v139, 4294901760
      %456 = vmatmul.f32.gmra.mxu0 %v455
      %v457 = vpop.f32.mrf.mxu0
      %v458 = vadd.f32 %v389, %v457
      %459 = vdwg.mxu0
      %v460 = vand.u32 %v155, 4294901760
      %461 = vmatpush.msra.mxu0 %v460
      %v462 = vand.u32 %v154, 4294901760
      %463 = vmatpush.msra.mxu0 %v462
      %v464 = vand.u32 %v153, 4294901760
      %465 = vmatpush.msra.mxu0 %v464
      %v466 = vand.u32 %v152, 4294901760
      %467 = vmatpush.msra.mxu0 %v466
      %v468 = vand.u32 %v151, 4294901760
      %469 = vmatpush.msra.mxu0 %v468
      %v470 = vand.u32 %v150, 4294901760
      %471 = vmatpush.msra.mxu0 %v470
      %v472 = vand.u32 %v149, 4294901760
      %473 = vmatpush.msra.mxu0 %v472
      %v474 = vand.u32 %v148, 4294901760
      %475 = vmatpush.msra.mxu0 %v474
      %v476 = vand.u32 %v147, 4294901760
      %477 = vmatpush.msra.mxu0 %v476
      %v478 = vand.u32 %v146, 4294901760
      %479 = vmatpush.msra.mxu0 %v478
      %v480 = vand.u32 %v145, 4294901760
      %481 = vmatpush.msra.mxu0 %v480
      %v482 = vand.u32 %v144, 4294901760
      %483 = vmatpush.msra.mxu0 %v482
      %v484 = vand.u32 %v143, 4294901760
      %485 = vmatpush.msra.mxu0 %v484
      %v486 = vand.u32 %v142, 4294901760
      %487 = vmatpush.msra.mxu0 %v486
      %v488 = vand.u32 %v141, 4294901760
      %489 = vmatpush.msra.mxu0 %v488
      %v490 = vand.u32 %v140, 4294901760
      %491 = vmatpush.msra.mxu0 %v490
      %v492 = vand.u32 %v139, 4294901760
      %493 = vmatmul.f32.gmra.mxu0 %v492
      %v494 = vpop.f32.mrf.mxu0
      %v495 = vadd.f32 %v458, %v494
      %496 = vdwg.mxu0
      %497 = vst [vmem:[%s138] sm:$0xff] %v495
      %p498 = scmp.lt.s32.totalorder %s13, 1
      %s499 = scalar_select %p498, %s13, 1
      %s500 = smul.addr %s499, 8
      %s501 = scalar_lea.vmem %s2, %s500
      // Predicated region
      $region29: #{linear_topk_gate.1} parent=27 // pred_check
        %p502 = pneg %p78
      $region30: #{linear_topk_gate.1} parent=27 // pred_check_branch
        %504 = sbr.rel (%p502) target = $region32
      $region31: #{linear_topk_gate.1} parent=27 // pred_region
        _
      $region32: #{linear_topk_gate.1} parent=27 // pred_fallthru
        _
    $region28: #{linear_topk_gate.1} parent=5 // pred_fallthru
      _
    %p505 = scmp.le.s32.totalorder 2, %s8
    // Predicated region
    $region33: #{linear_topk_gate.1} parent=5 // pred_check
      %p506 = pneg %p505
    $region34: #{linear_topk_gate.1} parent=5 // pred_check_branch
      %508 = sbr.rel (%p506) target = $region36
    $region35: #{linear_topk_gate.1} parent=5 // pred_region
      %s509 = ssub.s32 %s8, 2
      // Predicated region
      $region37: #{linear_topk_gate.1} parent=35 // pred_check
        %p510 = pneg %p84
      $region38: #{linear_topk_gate.1} parent=35 // pred_check_branch
        %512 = sbr.rel (%p510) target = $region40
      $region39: #{linear_topk_gate.1} parent=35 // pred_region
        %p513 = scmp.lt.s32.totalorder %s14, 1
        %s514 = scalar_select %p513, %s14, 1
        %s515 = smul.addr %s514, 8
        %s516 = scalar_lea.vmem %s2, %s515
      $region40: #{linear_topk_gate.1} parent=35 // pred_fallthru
        _
    $region36: #{linear_topk_gate.1} parent=5 // pred_fallthru
      _
  $region6: #{linear_topk_gate.1} parent=0 // loop_footer
    %s12 = sadd.s32 1, %s8
  $region7: #{linear_topk_gate.1} parent=0 // loop_footer_branch
    %7 = sbr.rel target = $region3
  $region8: #{linear_topk_gate.1} parent=0 // loop_exit
    _

</llo_original>
